<compile_context>
chip_gen: v7x
topology: tpu7x:2x2x1
jax: 0.10.0
libtpu: 0.0.40
codegen_flags: <defaults>
</compile_context>

<pallas_src>
import functools

import jax
import jax.numpy as jnp
from jax.experimental import pallas as pl
from jax.experimental.pallas import tpu as pltpu


# ---------------------------------------------------------------------------
# One-off probe: pin down pltpu.roll's sign convention (np.roll-like or not)
# so the depthwise tap shifts stay correct across JAX versions.  Runs a single
# (8,128) kernel once per process (cached).
# ---------------------------------------------------------------------------
@functools.lru_cache(maxsize=None)
def _roll_matches_np_roll() -> bool:
    x = jnp.arange(8 * 128, dtype=jnp.int32).reshape(8, 128)

    def _probe(x_ref, o_ref):
        o_ref[...] = pltpu.roll(x_ref[...], 1, 1)

    y = pl.pallas_call(_probe,
                       out_shape=jax.ShapeDtypeStruct((8, 128), jnp.int32))(x)
    # np.roll(x, 1, axis=1)[0, 1] == x[0, 0]
    return bool(y[0, 1] == x[0, 0])


# ---------------------------------------------------------------------------
# Fused kernel: expand 1x1 -> depthwise 3x3 -> project 1x1 (+BN, ReLU6, res)
# Everything is channels-first (C, H*W): spatial axis on lanes.
# ---------------------------------------------------------------------------
def _fused_block_kernel(*refs, H, W, stride, has_expand, use_res, roll_like_np):
    i = 0
    x_ref = refs[i]; i += 1
    if has_expand:
        w1_ref, s1_ref, b1_ref = refs[i], refs[i + 1], refs[i + 2]; i += 3
    wdw_ref, b2_ref = refs[i], refs[i + 1]; i += 2
    w3_ref, s3_ref, b3_ref = refs[i], refs[i + 1], refs[i + 2]; i += 3
    o_ref = refs[i]

    f32 = jnp.float32
    HW = H * W
    Ho = (H - 1) // stride + 1
    Wo = (W - 1) // stride + 1
    hidden = wdw_ref.shape[1]

    x = x_ref[0]                                            # (Cin, H*W), f32

    # ---- 1x1 expand: bf16 MXU operands, f32 accumulate; BN + ReLU6 --------
    if has_expand:
        hid = jnp.dot(w1_ref[...], x.astype(jnp.bfloat16),
                      preferred_element_type=f32)           # (hidden, H*W)
        hid = jnp.clip(hid * s1_ref[...] + b1_ref[...], 0.0, 6.0)
    else:
        hid = x                                             # hidden == Cin

    # ---- depthwise 3x3: 8 lane rolls (XLU) + hoisted edge masks (VPU, f32) -
    pos = jax.lax.broadcasted_iota(jnp.int32, (1, HW), 1)
    row = pos // W
    col = pos % W
    m_top = (row > 0).astype(f32)            # source row h-1 is valid
    m_bot = (row < H - 1).astype(f32)        # source row h+1 is valid
    m_lft = (col > 0).astype(f32)            # source col w-1 is valid
    m_rgt = (col < W - 1).astype(f32)        # source col w+1 is valid

    acc = hid * wdw_ref[4]                   # center tap: no shift, no mask
    for di in range(3):
        for dj in range(3):
            if di == 1 and dj == 1:
                continue
            off = (di - 1) * W + (dj - 1)    # want tap[p] = hid[p + off]
            amt = (-off if roll_like_np else off) % HW
            tap = pltpu.roll(hid, amt, 1)    # circular; wraps are masked below
            if di == 0:
                tap = tap * m_top
            elif di == 2:
                tap = tap * m_bot
            if dj == 0:
                tap = tap * m_lft
            elif dj == 2:
                tap = tap * m_rgt
            acc = acc + tap * wdw_ref[3 * di + dj]
    y = jnp.clip(acc + b2_ref[...], 0.0, 6.0)               # (hidden, H*W)

    # ---- stride handling ---------------------------------------------------
    if stride == 1:
        y_s = y
    else:
        # TODO(synk): accumulate taps only at output positions instead of
        # computing full-resolution y and discarding 3/4 of it.
        y_s = jax.lax.slice(y.reshape(hidden, H, W), (0, 0, 0),
                            (hidden, H, W), (1, stride, stride))
        y_s = y_s.reshape(hidden, Ho * Wo)

    # ---- 1x1 project: bf16 MXU operands; BN (+ residual) -------------------
    out = jnp.dot(w3_ref[...], y_s.astype(jnp.bfloat16),
                  preferred_element_type=f32)               # (oup, Ho*Wo)
    out = out * s3_ref[...] + b3_ref[...]
    if use_res:
        out = out + x                                       # stride==1, inp==oup
    o_ref[0] = out.astype(o_ref.dtype)


# ---------------------------------------------------------------------------
# Wrapper: fold BN running stats, keep channels-first, call the fused kernel
# ---------------------------------------------------------------------------
def inverted_residual_forward(x_nchw, params, *, inp, oup, stride, expand_ratio):
    assert stride in (1, 2)
    N, cin, H, W = x_nchw.shape
    assert cin == inp
    HW = H * W
    Ho = (H - 1) // stride + 1
    Wo = (W - 1) // stride + 1
    hidden = int(round(inp * expand_ratio))
    has_expand = expand_ratio != 1
    use_res = stride == 1 and inp == oup
    eps = 1e-5
    f32, bf16 = jnp.float32, jnp.bfloat16

    def bn_fold(g, beta, mean, var):
        # eval-mode BN:  y = (c - mean) / sqrt(var + eps) * g + beta
        s = (g / jnp.sqrt(var + eps)).astype(f32)
        return s, (beta - mean * s).astype(f32)

    # NCHW -> (N, C, H*W) is a FREE reshape (no transpose, no HBM round trip).
    x_flat = x_nchw.reshape(N, inp, HW)

    args = [x_flat]
    in_specs = [pl.BlockSpec((1, inp, HW), lambda n: (n, 0, 0))]

    if has_expand:
        s1, b1 = bn_fold(params["g1"], params["beta1"], params["m1"], params["v1"])
        args += [params["w1"].astype(bf16),                  # (hidden, inp)
                 s1.reshape(hidden, 1), b1.reshape(hidden, 1)]
        in_specs += [pl.BlockSpec((hidden, inp), lambda n: (0, 0)),
                     pl.BlockSpec((hidden, 1), lambda n: (0, 0)),
                     pl.BlockSpec((hidden, 1), lambda n: (0, 0))]

    s2, b2 = bn_fold(params["g2"], params["beta2"], params["m2"], params["v2"])
    # BN scale folded into the f32 depthwise weights; laid out (9, hidden, 1)
    # so each tap weight is a cheap leading-axis load.
    wdwf = (params["w_dw"] * s2[:, None, None]).astype(f32)
    wdwf = jnp.transpose(wdwf.reshape(hidden, 9), (1, 0)).reshape(9, hidden, 1)
    s3, b3 = bn_fold(params["g3"], params["beta3"], params["m3"], params["v3"])
    args += [wdwf, b2.reshape(hidden, 1),
             params["w3"].astype(bf16),                      # (oup, hidden)
             s3.reshape(oup, 1), b3.reshape(oup, 1)]
    in_specs += [pl.BlockSpec((9, hidden, 1), lambda n: (0, 0, 0)),
                 pl.BlockSpec((hidden, 1), lambda n: (0, 0)),
                 pl.BlockSpec((oup, hidden), lambda n: (0, 0)),
                 pl.BlockSpec((oup, 1), lambda n: (0, 0)),
                 pl.BlockSpec((oup, 1), lambda n: (0, 0))]

    out_flat = pl.pallas_call(
        functools.partial(_fused_block_kernel, H=H, W=W, stride=stride,
                          has_expand=has_expand, use_res=use_res,
                          roll_like_np=_roll_matches_np_roll()),
        out_shape=jax.ShapeDtypeStruct((N, oup, Ho * Wo), x_nchw.dtype),
        grid=(N,),
        in_specs=in_specs,
        out_specs=pl.BlockSpec((1, oup, Ho * Wo), lambda n: (n, 0, 0)),
        compiler_params=pltpu.CompilerParams(
            dimension_semantics=("parallel",),   # N=2 -> both v7x TensorCores
            vmem_limit_bytes=32 * 1024 * 1024),  # safe on v5e/v6e/v7x; tiny use
    )(*args)

    # Output is already channels-first -> NCHW via a free reshape.
    return out_flat.reshape(N, oup, Ho, Wo)


# ---------------------------------------------------------------------------
# Pure-JAX reference (eval-mode BN with running stats).  Mirrors the kernel's
# precision policy: 1x1-conv operands rounded to bf16 (MXU-native) with f32
# accumulation; depthwise conv in f32.
# ---------------------------------------------------------------------------
def reference_forward(x_nchw, params, *, inp, oup, stride, expand_ratio):
    eps = 1e-5
    f32 = jnp.float32
    hi = jax.lax.Precision.HIGHEST

    def bf16r(a):
        return a.astype(jnp.bfloat16).astype(f32)

    def bn(c, g, beta, m, v):
        return (c - m) * (g / jnp.sqrt(v + eps)) + beta

    x = jnp.transpose(x_nchw, (0, 2, 3, 1))                  # NHWC
    use_res = stride == 1 and inp == oup

    h = x
    if expand_ratio != 1:
        h = jnp.einsum("nhwc,kc->nhwk", bf16r(h), bf16r(params["w1"]),
                       precision=hi)
        h = jnp.clip(bn(h, params["g1"], params["beta1"],
                        params["m1"], params["v1"]), 0.0, 6.0)

    hidden = h.shape[-1]
    wdw = jnp.transpose(params["w_dw"], (1, 2, 0))[:, :, None, :]  # (3,3,1,hid)
    h = jax.lax.conv_general_dilated(
        h, wdw, (stride, stride), [(1, 1), (1, 1)],
        dimension_numbers=("NHWC", "HWIO", "NHWC"),
        feature_group_count=hidden, precision=hi)
    h = jnp.clip(bn(h, params["g2"], params["beta2"],
                    params["m2"], params["v2"]), 0.0, 6.0)

    h = jnp.einsum("nhwc,kc->nhwk", bf16r(h), bf16r(params["w3"]), precision=hi)
    h = bn(h, params["g3"], params["beta3"], params["m3"], params["v3"])
    if use_res:
        h = h + x
    return jnp.transpose(h, (0, 3, 1, 2))


# ---------------------------------------------------------------------------
# Main
# ---------------------------------------------------------------------------
if __name__ == "__main__":
    # Module config: InvertedResidual(inp=4, oup=4, stride=1, expand_ratio=4)
    inp, oup, stride, expand_ratio = 4, 4, 1, 4
    hidden = int(round(inp * expand_ratio))
    N, H, W = 2, 16, 16

    key = jax.random.PRNGKey(0)
    ks = jax.random.split(key, 16)

    # torch-layout weights: w1 (hidden,inp), w_dw (hidden,1,3,3)->(hidden,3,3),
    # w3 (oup,hidden); BN params g/beta + running stats m/v per stage.
    params = {
        "w1":    jax.random.normal(ks[0], (hidden, inp), jnp.float32) * 0.1,
        "w_dw":  jax.random.normal(ks[1], (hidden, 3, 3), jnp.float32) * 0.1,
        "w3":    jax.random.normal(ks[2], (oup, hidden), jnp.float32) * 0.1,
        "g1":    1.0 + 0.1 * jax.random.normal(ks[3], (hidden,), jnp.float32),
        "beta1": 0.1 * jax.random.normal(ks[4], (hidden,), jnp.float32),
        "m1":    0.1 * jax.random.normal(ks[5], (hidden,), jnp.float32),
        "v1":    0.5 + jax.random.uniform(ks[6], (hidden,), jnp.float32),
        "g2":    1.0 + 0.1 * jax.random.normal(ks[7], (hidden,), jnp.float32),
        "beta2": 0.1 * jax.random.normal(ks[8], (hidden,), jnp.float32),
        "m2":    0.1 * jax.random.normal(ks[9], (hidden,), jnp.float32),
        "v2":    0.5 + jax.random.uniform(ks[10], (hidden,), jnp.float32),
        "g3":    1.0 + 0.1 * jax.random.normal(ks[11], (oup,), jnp.float32),
        "beta3": 0.1 * jax.random.normal(ks[12], (oup,), jnp.float32),
        "m3":    0.1 * jax.random.normal(ks[13], (oup,), jnp.float32),
        "v3":    0.5 + jax.random.uniform(ks[14], (oup,), jnp.float32),
    }

    x = jax.random.normal(ks[15], (N, inp, H, W), jnp.float32)

    out = inverted_residual_forward(x, params, inp=inp, oup=oup,
                                    stride=stride, expand_ratio=expand_ratio)
    out = jax.block_until_ready(out)

    ref = reference_forward(x, params, inp=inp, oup=oup,
                            stride=stride, expand_ratio=expand_ratio)
    assert out.shape == (N, oup, H, W)
    # Tolerance reflects bf16 operand rounding in the 1x1 matmuls; the mean-abs
    # check guards against structural (layout / tap / mask) errors.
    assert jnp.allclose(out, ref, atol=1e-2, rtol=1e-2), "mismatch vs reference"
    assert float(jnp.mean(jnp.abs(out - ref))) < 1e-3, "systematic mismatch"

    print("KERNEL_OK")
</pallas_src>

<mosaic_0001>
module attributes {stable_mosaic.version = 11 : i64} {
  func.func @_probe(%arg0: memref<8x128xi32, #tpu.memory_space<vmem>>, %arg1: memref<8x128xi32, #tpu.memory_space<vmem>>) attributes {dimension_semantics = [], scalar_prefetch = 0 : i64, scratch_operands = 0 : i64, tpu.core_type = #tpu.core_type<tc>} {
    %c0 = arith.constant 0 : index
    %c0_0 = arith.constant 0 : index
    %0 = vector.load %arg0[%c0, %c0_0] : memref<8x128xi32, #tpu.memory_space<vmem>>, vector<8x128xi32>
    %c1_i32 = arith.constant 1 : i32
    %1 = tpu.dynamic_rotate %0 by %c1_i32 dim 1 : vector<8x128xi32>, i32 -> vector<8x128xi32>
    %c0_1 = arith.constant 0 : index
    %c0_2 = arith.constant 0 : index
    %2 = vector.load %arg1[%c0_1, %c0_2] : memref<8x128xi32, #tpu.memory_space<vmem>>, vector<8x128xi32>
    tpu.vector_store %arg1[%c0_1, %c0_2], %1 {strides = array<i32>} : memref<8x128xi32, #tpu.memory_space<vmem>>, vector<8x128xi32>,
    return
  }
}

</mosaic_0001>

<llo_original>
// kernel: tpu_custom_call.1
$region0: #{tpu_custom_call.1}
  #allocation0 [shape = 'u32[]', space=smem, size = 0x4, offset = 0x4, fixed_abs, tag = 'smem constant byte address 0x4 - core index']
  #allocation1 [shape = 'u32[144,128]{1,0:T(1,128)}', space=vmem, size = 0x12000, scoped, tag = 'internal scratch']
  %s0 = inlined_call_operand.hbm [shape: s32[8,128], index: 0, kind: input, shape index: {}]
  %s1 = inlined_call_operand.hbm [shape: s32[8,128], index: 1, kind: output, shape index: {}]
  %s2 = sld [smem:[#allocation0]]
  $region18: #{tpu_custom_call.1} parent=0
    _
  %s4 = ssub.s32 1, %s2
  %s5 = scalar_select 0, %s4, %s2
  $region1: #{tpu_custom_call.1} parent=0
    #allocation2 [shape = 'u8[4096]{0}', space=vmem, size = 0x1000, scoped, tag = 'input window, operand 0, single buffered']
    #allocation3 [shape = 's32[1]{0}', space=sflag, size = 0x4, scoped, tag = 'scoped memory for tpu_custom_call.1']
    #allocation4 [shape = 's32[1]{0}', space=sflag, size = 0x4, scoped, tag = 'scoped memory for tpu_custom_call.1']
    #allocation5 [shape = 'u8[4096]{0}', space=vmem, size = 0x1000, scoped, tag = 'output window, operand 0, single buffered']
    %6 = vsyncpa [#allocation3], 0
    %7 = vsyncpa [#allocation4], 0
    // Predicated region
    $region2: #{tpu_custom_call.1} parent=1 // pred_check
      _
    $region3: #{tpu_custom_call.1} parent=1 // pred_check_branch
      %9 = sbr.rel (0) target = $region5
    $region4: #{tpu_custom_call.1} parent=1 // pred_region
      %s11 = ssub.s32 128, 128
      %12 = vsyncadd [#allocation3], %s11
      %s14 = sshll.u32 [#allocation2], 4
      %s15 = int_to_ptr.vmem [resolvable:$true] %s14
      %17 = dma.hbm_to_vmem [thread:$0]  %s0, 128, %s15, [#allocation3]
    $region5: #{tpu_custom_call.1} parent=1 // pred_fallthru
      _
    // Predicated region
    $region6: #{tpu_custom_call.1} parent=1 // pred_check
      _
    $region7: #{tpu_custom_call.1} parent=1 // pred_check_branch
      %19 = sbr.rel (0) target = $region9
    $region8: #{tpu_custom_call.1} parent=1 // pred_region
      %20 = dma.done [#allocation3], 128
    $region9: #{tpu_custom_call.1} parent=1 // pred_fallthru
      _
    %v21 = vld [vmem:[#allocation2] sm:$0xff]
    %22 = vrot.lane.b32.xlu0 %v21, 1
    %v23 = vpop.permute.xlu0 %22
    %24 = vst [vmem:[#allocation5] sm:$0xff] %v23
    // Predicated region
    $region10: #{tpu_custom_call.1} parent=1 // pred_check
      _
    $region11: #{tpu_custom_call.1} parent=1 // pred_check_branch
      %26 = sbr.rel (0) target = $region13
    $region12: #{tpu_custom_call.1} parent=1 // pred_region
      %s28 = ssub.s32 128, 128
      %29 = vsyncadd [#allocation4], %s28
      %s31 = sshll.u32 [#allocation5], 4
      %s32 = int_to_ptr.vmem [resolvable:$true] %s31
      %34 = dma.vmem_to_hbm [thread:$0]  %s32, 128, %s1, [#allocation4]
    $region13: #{tpu_custom_call.1} parent=1 // pred_fallthru
      _
    // Predicated region
    $region14: #{tpu_custom_call.1} parent=1 // pred_check
      _
    $region15: #{tpu_custom_call.1} parent=1 // pred_check_branch
      %36 = sbr.rel (0) target = $region17
    $region16: #{tpu_custom_call.1} parent=1 // pred_region
      %37 = dma.done [#allocation4], 128
    $region17: #{tpu_custom_call.1} parent=1 // pred_fallthru
      _
    %38 = vsyncpa [#allocation3], 1
    %39 = vsyncpa [#allocation4], 1

</llo_original>
